<compile_context>
chip_gen: v7x
topology: tpu7x:2x2x1
jax: 0.10.0
libtpu: 0.0.40
codegen_flags: <defaults>
</compile_context>

<pallas_src>
import functools
import math

import jax
import jax.numpy as jnp
from jax.experimental import pallas as pl
from jax.experimental.pallas import tpu as pltpu


def mlp_kernel(x_ref, w1_ref, b1_ref, w2_ref, b2_ref, w3_ref, b3_ref, o_ref, *, sub):
    # x_ref: (TM, 13) f32 block (batch on sublanes, as stored in HBM).
    n_sub = x_ref.shape[0] // sub

    def body(c, carry):
        start = pl.multiple_of(c * sub, sub)
        # (sub, 13) f32 -> bf16 MXU input.
        xt = x_ref[pl.ds(start, sub), :].astype(jnp.bfloat16)
        # Layer 1: contract over the 13-feature axis of both operands -> (64, sub),
        # i.e. W1 @ x_chunk^T without materializing a transpose; batch ends up on lanes.
        h1 = jax.lax.dot_general(
            w1_ref[...], xt,
            dimension_numbers=(((1,), (1,)), ((), ())),
            preferred_element_type=jnp.float32)
        # bf16 epilogue (bias + ReLU): h1 must be bf16 for the layer-2 matmul anyway.
        h1 = jnp.maximum(h1.astype(jnp.bfloat16) + b1_ref[...], 0)
        # Layer 2: (64, 64) @ (64, sub) -> (64, sub), f32 accumulate; bias/ReLU in f32.
        h2 = jnp.dot(w2_ref[...], h1, preferred_element_type=jnp.float32)
        h2 = jnp.maximum(h2 + b2_ref[...], 0.0)
        # Layer 3 (64 -> 1): VPU multiply + cross-sublane (XLU) reduce in f32;
        # keeps the MXU free and yields a lane-dense (1, sub) row.
        o = jnp.sum(h2 * w3_ref[...], axis=0, keepdims=True) + b3_ref[...]
        o_ref[:, pl.ds(start, sub)] = o.astype(o_ref.dtype)
        return carry

    jax.lax.fori_loop(0, n_sub, body, None, unroll=True)


def _round_up(n, m):
    return ((n + m - 1) // m) * m


def regression_model_hyper3_forward(x, params, *, tm=4096, sub=512):
    """x: (B, 13) float32 -> (B, 1) float32. Fused 3-layer MLP, batch-tiled Pallas kernel."""
    w1, b1, w2, b2, w3, b3 = params
    B = x.shape[0]

    # Lane sub-chunk (in-kernel live-range bound); must be a multiple of 128.
    sub = _round_up(max(sub, 128), 128)
    # Big grid tile amortizes per-step pipeline overhead; cap it so there are >= 2 grid
    # steps when the batch allows (2-TensorCore sharding on v7x; no-op on v5e/v6e).
    tm_cap = _round_up(pl.cdiv(B, 2), sub)
    TM = max(sub, min(_round_up(tm, sub), tm_cap))
    n_tiles = pl.cdiv(B, TM)
    # Prefer an even grid-step count for balanced 2-TC sharding.
    if n_tiles > 1 and n_tiles % 2 == 1:
        TM = max(sub, _round_up(pl.cdiv(B, n_tiles + 1), sub))
        n_tiles = pl.cdiv(B, TM)

    # Tiny one-time weight casts (weights stay VMEM-resident across the whole grid).
    w1b = w1.astype(jnp.bfloat16)          # (64, 13)
    b1b = b1.astype(jnp.bfloat16)          # (64, 1)
    w2b = w2.astype(jnp.bfloat16)          # (64, 64)

    const = lambda i: (0, 0)
    out = pl.pallas_call(
        functools.partial(mlp_kernel, sub=sub),
        out_shape=jax.ShapeDtypeStruct((1, B), jnp.float32),
        grid=(n_tiles,),
        in_specs=[
            pl.BlockSpec((TM, 13), lambda i: (i, 0)),              # x tile (as stored)
            pl.BlockSpec((64, 13), const),                         # W1 (bf16)
            pl.BlockSpec((64, 1), const),                          # b1 (bf16)
            pl.BlockSpec((64, 64), const),                         # W2 (bf16)
            pl.BlockSpec((64, 1), const),                          # b2 (f32)
            pl.BlockSpec((64, 1), const),                          # W3 column (f32)
            pl.BlockSpec((1, 1), const),                           # b3 (f32)
        ],
        out_specs=pl.BlockSpec((1, TM), lambda i: (0, i)),
        compiler_params=pltpu.CompilerParams(
            dimension_semantics=("parallel",)),
    )(x, w1b, b1b, w2b, b2, w3, b3)

    return out.reshape(B, 1)


def init_params(key):
    """nn.Linear-style init (uniform +-1/sqrt(fan_in)). W1/W2 stored (out, in) (PyTorch
    layout); last layer's weight stored as a (64, 1) column; biases as (out, 1) columns."""
    dims = [(13, 64), (64, 64), (64, 1)]
    keys = jax.random.split(key, 2 * len(dims))
    params = []
    for i, (fan_in, fan_out) in enumerate(dims):
        bound = 1.0 / math.sqrt(fan_in)
        w = jax.random.uniform(keys[2 * i], (fan_out, fan_in),
                               minval=-bound, maxval=bound, dtype=jnp.float32)
        b = jax.random.uniform(keys[2 * i + 1], (fan_out, 1),
                               minval=-bound, maxval=bound, dtype=jnp.float32)
        params.extend([w, b])
    w1, b1, w2, b2, w3, b3 = params
    return (w1, b1, w2, b2, w3.T, b3)      # w3 -> (64, 1) column


def reference_forward(x, params):
    """Plain-JAX reference with the same precision recipe as the kernel
    (bf16 matmul inputs, f32 MXU accumulation, bf16 layer-1 epilogue, f32 layer-3)."""
    w1, b1, w2, b2, w3, b3 = params
    h1 = jnp.dot(x.astype(jnp.bfloat16), w1.astype(jnp.bfloat16).T,
                 preferred_element_type=jnp.float32)
    h1 = jnp.maximum(h1.astype(jnp.bfloat16) + b1.astype(jnp.bfloat16).T, 0)
    h2 = jnp.dot(h1, w2.astype(jnp.bfloat16).T, preferred_element_type=jnp.float32)
    h2 = jnp.maximum(h2 + b2.T, 0.0)
    return h2 @ w3 + b3.T                                          # (B, 1) f32


if __name__ == "__main__":
    key = jax.random.PRNGKey(0)
    k_x, k_x2, k_p = jax.random.split(key, 3)
    params = init_params(k_p)

    # Small batch: single (partial) tile.
    x_small = jax.random.normal(k_x, (8, 13), dtype=jnp.float32)
    out_small = jax.block_until_ready(regression_model_hyper3_forward(x_small, params))
    ref_small = reference_forward(x_small, params)
    assert out_small.shape == (8, 1), out_small.shape
    assert jnp.allclose(out_small, ref_small, atol=1e-3, rtol=1e-3), "small-batch mismatch"

    # Multi-tile batch, not a multiple of 128: exercises the ragged last block and the
    # multi-step grid (2 tiles of 256 with small tm/sub overrides).
    x_big = jax.random.normal(k_x2, (300, 13), dtype=jnp.float32)
    out_big = jax.block_until_ready(
        regression_model_hyper3_forward(x_big, params, tm=256, sub=128))
    ref_big = reference_forward(x_big, params)
    assert out_big.shape == (300, 1), out_big.shape
    assert jnp.allclose(out_big, ref_big, atol=1e-3, rtol=1e-3), "multi-tile mismatch"

    print("KERNEL_OK")
</pallas_src>

<mosaic_0001>
module attributes {stable_mosaic.version = 11 : i64} {
  func.func @mlp_kernel(%arg0: i32, %arg1: memref<512x13xf32, #tpu.memory_space<vmem>>, %arg2: memref<64x13xbf16, #tpu.memory_space<vmem>>, %arg3: memref<64x1xbf16, #tpu.memory_space<vmem>>, %arg4: memref<64x64xbf16, #tpu.memory_space<vmem>>, %arg5: memref<64x1xf32, #tpu.memory_space<vmem>>, %arg6: memref<64x1xf32, #tpu.memory_space<vmem>>, %arg7: memref<1x1xf32, #tpu.memory_space<vmem>>, %arg8: memref<1x512xf32, #tpu.memory_space<vmem>>) attributes {dimension_semantics = [#tpu.dimension_semantics<parallel>], iteration_bounds = array<i64: 1>, scalar_prefetch = 0 : i64, scratch_operands = 0 : i64, tpu.core_type = #tpu.core_type<tc>, window_params = [{transform_indices = @transform_0, window_bounds = array<i64: 512, 13>}, {pipeline_mode = #tpu.pipeline_mode<synchronous>, transform_indices = @transform_1, window_bounds = array<i64: 64, 13>}, {pipeline_mode = #tpu.pipeline_mode<synchronous>, transform_indices = @transform_2, window_bounds = array<i64: 64, 1>}, {pipeline_mode = #tpu.pipeline_mode<synchronous>, transform_indices = @transform_3, window_bounds = array<i64: 64, 64>}, {pipeline_mode = #tpu.pipeline_mode<synchronous>, transform_indices = @transform_4, window_bounds = array<i64: 64, 1>}, {pipeline_mode = #tpu.pipeline_mode<synchronous>, transform_indices = @transform_5, window_bounds = array<i64: 64, 1>}, {pipeline_mode = #tpu.pipeline_mode<synchronous>, transform_indices = @transform_6, window_bounds = array<i64: 1, 1>}, {transform_indices = @transform_7, window_bounds = array<i64: 1, 512>}]} {
    %c0_i32 = arith.constant 0 : i32
    %c512_i32 = arith.constant 512 : i32
    %0 = arith.muli %c0_i32, %c512_i32 : i32
    %1 = tpu.assume_multiple %0, 512 : i32
    %2 = arith.index_cast %1 : i32 to index
    %c0 = arith.constant 0 : index
    %3 = vector.load %arg1[%2, %c0] : memref<512x13xf32, #tpu.memory_space<vmem>>, vector<512x13xf32>
    %4 = arith.truncf %3 : vector<512x13xf32> to vector<512x13xbf16>
    %c0_0 = arith.constant 0 : index
    %c0_1 = arith.constant 0 : index
    %5 = vector.load %arg2[%c0_0, %c0_1] : memref<64x13xbf16, #tpu.memory_space<vmem>>, vector<64x13xbf16>
    %cst = arith.constant dense<0.000000e+00> : vector<64x512xf32>
    %6 = tpu.matmul %5, %4, %cst {dimension_numbers = #tpu.dot_dimension_numbers<[1], [1], [0], [0], [0, 0, 1, 0], [], []>} : vector<64x13xbf16>, vector<512x13xbf16>, vector<64x512xf32> -> vector<64x512xf32>
    %7 = arith.truncf %6 : vector<64x512xf32> to vector<64x512xbf16>
    %c0_2 = arith.constant 0 : index
    %c0_3 = arith.constant 0 : index
    %8 = vector.load %arg3[%c0_2, %c0_3] : memref<64x1xbf16, #tpu.memory_space<vmem>>, vector<64x1xbf16>
    %9 = vector.broadcast %8 : vector<64x1xbf16> to vector<64x512xbf16>
    %10 = arith.addf %7, %9 : vector<64x512xbf16>
    %cst_4 = arith.constant 0.000000e+00 : bf16
    %11 = vector.broadcast %cst_4 : bf16 to vector<64x512xbf16>
    %12 = arith.maximumf %10, %11 : vector<64x512xbf16>
    %c0_5 = arith.constant 0 : index
    %c0_6 = arith.constant 0 : index
    %13 = vector.load %arg4[%c0_5, %c0_6] : memref<64x64xbf16, #tpu.memory_space<vmem>>, vector<64x64xbf16>
    %cst_7 = arith.constant dense<0.000000e+00> : vector<64x512xf32>
    %14 = tpu.matmul %13, %12, %cst_7 {dimension_numbers = #tpu.dot_dimension_numbers<[1], [0], [0], [1], [0, 0, 1, 1], [], []>} : vector<64x64xbf16>, vector<64x512xbf16>, vector<64x512xf32> -> vector<64x512xf32>
    %c0_8 = arith.constant 0 : index
    %c0_9 = arith.constant 0 : index
    %15 = vector.load %arg5[%c0_8, %c0_9] : memref<64x1xf32, #tpu.memory_space<vmem>>, vector<64x1xf32>
    %16 = vector.broadcast %15 : vector<64x1xf32> to vector<64x512xf32>
    %17 = arith.addf %14, %16 : vector<64x512xf32>
    %cst_10 = arith.constant 0.000000e+00 : f32
    %18 = vector.broadcast %cst_10 : f32 to vector<64x512xf32>
    %19 = arith.maximumf %17, %18 : vector<64x512xf32>
    %c0_11 = arith.constant 0 : index
    %c0_12 = arith.constant 0 : index
    %20 = vector.load %arg6[%c0_11, %c0_12] : memref<64x1xf32, #tpu.memory_space<vmem>>, vector<64x1xf32>
    %21 = vector.broadcast %20 : vector<64x1xf32> to vector<64x512xf32>
    %22 = arith.mulf %19, %21 : vector<64x512xf32>
    %cst_13 = arith.constant dense<0.000000e+00> : vector<512xf32>
    %23 = vector.multi_reduction <add>, %22, %cst_13 [0] : vector<64x512xf32> to vector<512xf32>
    %24 = vector.shape_cast %23 : vector<512xf32> to vector<1x512xf32>
    %c0_14 = arith.constant 0 : index
    %c0_15 = arith.constant 0 : index
    %25 = vector.load %arg7[%c0_14, %c0_15] : memref<1x1xf32, #tpu.memory_space<vmem>>, vector<1x1xf32>
    %26 = vector.broadcast %25 : vector<1x1xf32> to vector<1x512xf32>
    %27 = arith.addf %24, %26 : vector<1x512xf32>
    %c0_16 = arith.constant 0 : index
    %28 = arith.index_cast %1 : i32 to index
    %29 = vector.load %arg8[%c0_16, %28] : memref<1x512xf32, #tpu.memory_space<vmem>>, vector<1x512xf32>
    tpu.vector_store %arg8[%c0_16, %28], %27 {strides = array<i32>} : memref<1x512xf32, #tpu.memory_space<vmem>>, vector<1x512xf32>,
    %c1_i32 = arith.constant 1 : i32
    return
  }
  func.func @transform_0(%arg0: i32) -> (i32, i32) {
    %c0_i32 = arith.constant 0 : i32
    %c0_i32_0 = arith.constant 0 : i32
    return %arg0, %c0_i32 : i32, i32
  }
  func.func @transform_1(%arg0: i32) -> (i32, i32) {
    %c0_i32 = arith.constant 0 : i32
    %c0_i32_0 = arith.constant 0 : i32
    %c0_i32_1 = arith.constant 0 : i32
    return %c0_i32, %c0_i32_0 : i32, i32
  }
  func.func @transform_2(%arg0: i32) -> (i32, i32) {
    %c0_i32 = arith.constant 0 : i32
    %c0_i32_0 = arith.constant 0 : i32
    %c0_i32_1 = arith.constant 0 : i32
    return %c0_i32, %c0_i32_0 : i32, i32
  }
  func.func @transform_3(%arg0: i32) -> (i32, i32) {
    %c0_i32 = arith.constant 0 : i32
    %c0_i32_0 = arith.constant 0 : i32
    %c0_i32_1 = arith.constant 0 : i32
    return %c0_i32, %c0_i32_0 : i32, i32
  }
  func.func @transform_4(%arg0: i32) -> (i32, i32) {
    %c0_i32 = arith.constant 0 : i32
    %c0_i32_0 = arith.constant 0 : i32
    %c0_i32_1 = arith.constant 0 : i32
    return %c0_i32, %c0_i32_0 : i32, i32
  }
  func.func @transform_5(%arg0: i32) -> (i32, i32) {
    %c0_i32 = arith.constant 0 : i32
    %c0_i32_0 = arith.constant 0 : i32
    %c0_i32_1 = arith.constant 0 : i32
    return %c0_i32, %c0_i32_0 : i32, i32
  }
  func.func @transform_6(%arg0: i32) -> (i32, i32) {
    %c0_i32 = arith.constant 0 : i32
    %c0_i32_0 = arith.constant 0 : i32
    %c0_i32_1 = arith.constant 0 : i32
    return %c0_i32, %c0_i32_0 : i32, i32
  }
  func.func @transform_7(%arg0: i32) -> (i32, i32) {
    %c0_i32 = arith.constant 0 : i32
    %c0_i32_0 = arith.constant 0 : i32
    return %c0_i32, %arg0 : i32, i32
  }
}

</mosaic_0001>

<llo_original>
// kernel: tpu_custom_call.1
$region0: #{tpu_custom_call.1}
  #allocation0 [shape = 'u32[]', space=smem, size = 0x4, offset = 0x4, fixed_abs, tag = 'smem constant byte address 0x4 - core index']
  #allocation1 [shape = 'u32[144,128]{1,0:T(1,128)}', space=vmem, size = 0x12000, scoped, tag = 'internal scratch']
  #allocation2 [shape = 'f32[1,1]{1,0:T(1,128)S(1)}', space=vmem, size = 0x200, scoped, tag = 'scoped memory for tpu_custom_call.1']
  %s0 = inlined_call_operand.vmem [shape: f32[8,13], index: 0, kind: input, shape index: {}]
  %s1 = inlined_call_operand.vmem [shape: bf16[64,13], index: 1, kind: input, shape index: {}]
  %s2 = inlined_call_operand.vmem [shape: bf16[64,1], index: 2, kind: input, shape index: {}]
  %s3 = inlined_call_operand.vmem [shape: bf16[64,64], index: 3, kind: input, shape index: {}]
  %s4 = inlined_call_operand.vmem [shape: f32[64,1], index: 4, kind: input, shape index: {}]
  %s5 = inlined_call_operand.vmem [shape: f32[64,1], index: 5, kind: input, shape index: {}]
  %s6 = inlined_call_operand.<no memory space> [shape: f32[1,1], index: 6, kind: input, shape index: {}]
  %s7 = inlined_call_operand.hbm [shape: f32[1,8], index: 7, kind: output, shape index: {}]
  %s8 = sld [smem:[#allocation0]]
  $region38: #{tpu_custom_call.1} parent=0
    _
  %s10 = ssub.s32 1, %s8
  %s11 = scalar_select 0, %s10, %s8
  %v12 = vstv %s6
  %13 = vst [vmem:[#allocation2] sm:$0x1] %v12
  $region1: #{tpu_custom_call.1} parent=0
    #allocation3 [shape = 'u8[2048]{0}', space=vmem, size = 0x800, scoped, tag = 'output window, operand 0, single buffered']
    #allocation4 [shape = 's32[1]{0}', space=sflag, size = 0x4, scoped, tag = 'scoped memory for tpu_custom_call.1']
    %14 = vsyncpa [#allocation4], 0
    // Predicated region
    $region2: #{tpu_custom_call.1} parent=1 // pred_check
      _
    $region3: #{tpu_custom_call.1} parent=1 // pred_check_branch
      %16 = sbr.rel (0) target = $region5
    $region4: #{tpu_custom_call.1} parent=1 // pred_region
      _
    $region5: #{tpu_custom_call.1} parent=1 // pred_fallthru
      _
    // Predicated region
    $region6: #{tpu_custom_call.1} parent=1 // pred_check
      _
    $region7: #{tpu_custom_call.1} parent=1 // pred_check_branch
      %18 = sbr.rel (0) target = $region9
    $region8: #{tpu_custom_call.1} parent=1 // pred_region
      _
    $region9: #{tpu_custom_call.1} parent=1 // pred_fallthru
      _
    // Predicated region
    $region10: #{tpu_custom_call.1} parent=1 // pred_check
      _
    $region11: #{tpu_custom_call.1} parent=1 // pred_check_branch
      %20 = sbr.rel (0) target = $region13
    $region12: #{tpu_custom_call.1} parent=1 // pred_region
      _
    $region13: #{tpu_custom_call.1} parent=1 // pred_fallthru
      _
    // Predicated region
    $region14: #{tpu_custom_call.1} parent=1 // pred_check
      _
    $region15: #{tpu_custom_call.1} parent=1 // pred_check_branch
      %22 = sbr.rel (0) target = $region17
    $region16: #{tpu_custom_call.1} parent=1 // pred_region
      _
    $region17: #{tpu_custom_call.1} parent=1 // pred_fallthru
      _
    // Predicated region
    $region18: #{tpu_custom_call.1} parent=1 // pred_check
      _
    $region19: #{tpu_custom_call.1} parent=1 // pred_check_branch
      %24 = sbr.rel (0) target = $region21
    $region20: #{tpu_custom_call.1} parent=1 // pred_region
      _
    $region21: #{tpu_custom_call.1} parent=1 // pred_fallthru
      _
    // Predicated region
    $region22: #{tpu_custom_call.1} parent=1 // pred_check
      _
    $region23: #{tpu_custom_call.1} parent=1 // pred_check_branch
      %26 = sbr.rel (0) target = $region25
    $region24: #{tpu_custom_call.1} parent=1 // pred_region
      _
    $region25: #{tpu_custom_call.1} parent=1 // pred_fallthru
      _
    // Predicated region
    $region26: #{tpu_custom_call.1} parent=1 // pred_check
      _
    $region27: #{tpu_custom_call.1} parent=1 // pred_check_branch
      %28 = sbr.rel (0) target = $region29
    $region28: #{tpu_custom_call.1} parent=1 // pred_region
      _
    $region29: #{tpu_custom_call.1} parent=1 // pred_fallthru
      _
    %v30 = vld [vmem:[%s0] sm:$0xff]
    %v31 = vld [vmem:[%s0 + $0x8] sm:$0xff]
    %v32 = vld [vmem:[%s0 + $0x10] sm:$0xff]
    %v33 = vld [vmem:[%s0 + $0x18] sm:$0xff]
    %v34 = vld [vmem:[%s0 + $0x20] sm:$0xff]
    %v35 = vld [vmem:[%s0 + $0x28] sm:$0xff]
    %v36 = vld [vmem:[%s0 + $0x30] sm:$0xff]
    %v37 = vld [vmem:[%s0 + $0x38] sm:$0xff]
    %v38 = vld [vmem:[%s0 + $0x40] sm:$0xff]
    %v39 = vld [vmem:[%s0 + $0x48] sm:$0xff]
    %v40 = vld [vmem:[%s0 + $0x50] sm:$0xff]
    %v41 = vld [vmem:[%s0 + $0x58] sm:$0xff]
    %v42 = vld [vmem:[%s0 + $0x60] sm:$0xff]
    %v43 = vld [vmem:[%s0 + $0x68] sm:$0xff]
    %v44 = vld [vmem:[%s0 + $0x70] sm:$0xff]
    %v45 = vld [vmem:[%s0 + $0x78] sm:$0xff]
    %v46 = vld [vmem:[%s0 + $0x80] sm:$0xff]
    %v47 = vld [vmem:[%s0 + $0x88] sm:$0xff]
    %v48 = vld [vmem:[%s0 + $0x90] sm:$0xff]
    %v49 = vld [vmem:[%s0 + $0x98] sm:$0xff]
    %v50 = vld [vmem:[%s0 + $0xa0] sm:$0xff]
    %v51 = vld [vmem:[%s0 + $0xa8] sm:$0xff]
    %v52 = vld [vmem:[%s0 + $0xb0] sm:$0xff]
    %v53 = vld [vmem:[%s0 + $0xb8] sm:$0xff]
    %v54 = vld [vmem:[%s0 + $0xc0] sm:$0xff]
    %v55 = vld [vmem:[%s0 + $0xc8] sm:$0xff]
    %v56 = vld [vmem:[%s0 + $0xd0] sm:$0xff]
    %v57 = vld [vmem:[%s0 + $0xd8] sm:$0xff]
    %v58 = vld [vmem:[%s0 + $0xe0] sm:$0xff]
    %v59 = vld [vmem:[%s0 + $0xe8] sm:$0xff]
    %v60 = vld [vmem:[%s0 + $0xf0] sm:$0xff]
    %v61 = vld [vmem:[%s0 + $0xf8] sm:$0xff]
    %v62 = vld [vmem:[%s0 + $0x100] sm:$0xff]
    %v63 = vld [vmem:[%s0 + $0x108] sm:$0xff]
    %v64 = vld [vmem:[%s0 + $0x110] sm:$0xff]
    %v65 = vld [vmem:[%s0 + $0x118] sm:$0xff]
    %v66 = vld [vmem:[%s0 + $0x120] sm:$0xff]
    %v67 = vld [vmem:[%s0 + $0x128] sm:$0xff]
    %v68 = vld [vmem:[%s0 + $0x130] sm:$0xff]
    %v69 = vld [vmem:[%s0 + $0x138] sm:$0xff]
    %v70 = vld [vmem:[%s0 + $0x140] sm:$0xff]
    %v71 = vld [vmem:[%s0 + $0x148] sm:$0xff]
    %v72 = vld [vmem:[%s0 + $0x150] sm:$0xff]
    %v73 = vld [vmem:[%s0 + $0x158] sm:$0xff]
    %v74 = vld [vmem:[%s0 + $0x160] sm:$0xff]
    %v75 = vld [vmem:[%s0 + $0x168] sm:$0xff]
    %v76 = vld [vmem:[%s0 + $0x170] sm:$0xff]
    %v77 = vld [vmem:[%s0 + $0x178] sm:$0xff]
    %v78 = vld [vmem:[%s0 + $0x180] sm:$0xff]
    %v79 = vld [vmem:[%s0 + $0x188] sm:$0xff]
    %v80 = vld [vmem:[%s0 + $0x190] sm:$0xff]
    %v81 = vld [vmem:[%s0 + $0x198] sm:$0xff]
    %v82 = vld [vmem:[%s0 + $0x1a0] sm:$0xff]
    %v83 = vld [vmem:[%s0 + $0x1a8] sm:$0xff]
    %v84 = vld [vmem:[%s0 + $0x1b0] sm:$0xff]
    %v85 = vld [vmem:[%s0 + $0x1b8] sm:$0xff]
    %v86 = vld [vmem:[%s0 + $0x1c0] sm:$0xff]
    %v87 = vld [vmem:[%s0 + $0x1c8] sm:$0xff]
    %v88 = vld [vmem:[%s0 + $0x1d0] sm:$0xff]
    %v89 = vld [vmem:[%s0 + $0x1d8] sm:$0xff]
    %v90 = vld [vmem:[%s0 + $0x1e0] sm:$0xff]
    %v91 = vld [vmem:[%s0 + $0x1e8] sm:$0xff]
    %v92 = vld [vmem:[%s0 + $0x1f0] sm:$0xff]
    %v93 = vld [vmem:[%s0 + $0x1f8] sm:$0xff]
    %v94 = vpack.c.bf16 %v31, %v30
    %v95 = vpack.c.bf16 %v33, %v32
    %v96 = vpack.c.bf16 %v35, %v34
    %v97 = vpack.c.bf16 %v37, %v36
    %v98 = vpack.c.bf16 %v39, %v38
    %v99 = vpack.c.bf16 %v41, %v40
    %v100 = vpack.c.bf16 %v43, %v42
    %v101 = vpack.c.bf16 %v45, %v44
    %v102 = vpack.c.bf16 %v47, %v46
    %v103 = vpack.c.bf16 %v49, %v48
    %v104 = vpack.c.bf16 %v51, %v50
    %v105 = vpack.c.bf16 %v53, %v52
    %v106 = vpack.c.bf16 %v55, %v54
    %v107 = vpack.c.bf16 %v57, %v56
    %v108 = vpack.c.bf16 %v59, %v58
    %v109 = vpack.c.bf16 %v61, %v60
    %v110 = vpack.c.bf16 %v63, %v62
    %v111 = vpack.c.bf16 %v65, %v64
    %v112 = vpack.c.bf16 %v67, %v66
    %v113 = vpack.c.bf16 %v69, %v68
    %v114 = vpack.c.bf16 %v71, %v70
    %v115 = vpack.c.bf16 %v73, %v72
    %v116 = vpack.c.bf16 %v75, %v74
    %v117 = vpack.c.bf16 %v77, %v76
    %v118 = vpack.c.bf16 %v79, %v78
    %v119 = vpack.c.bf16 %v81, %v80
    %v120 = vpack.c.bf16 %v83, %v82
    %v121 = vpack.c.bf16 %v85, %v84
    %v122 = vpack.c.bf16 %v87, %v86
    %v123 = vpack.c.bf16 %v89, %v88
    %v124 = vpack.c.bf16 %v91, %v90
    %v125 = vpack.c.bf16 %v93, %v92
    %v126 = vld [vmem:[%s1] sm:$0xf]
    %v127 = vld [vmem:[%s1 + $0x4] sm:$0xf]
    %v128 = vld [vmem:[%s1 + $0x8] sm:$0xf]
    %v129 = vld [vmem:[%s1 + $0xc] sm:$0xf]
    %v130 = vld [vmem:[%s1 + $0x10] sm:$0xf]
    %v131 = vld [vmem:[%s1 + $0x14] sm:$0xf]
    %v132 = vld [vmem:[%s1 + $0x18] sm:$0xf]
    %v133 = vld [vmem:[%s1 + $0x1c] sm:$0xf]
    %v142 = vunpack.c.l.b16 %v126
    %v143 = vunpack.c.l.b16 %v127
    %v144 = vunpack.c.l.b16 %v128
    %v145 = vunpack.c.l.b16 %v129
    %v146 = vunpack.c.l.b16 %v130
    %v147 = vunpack.c.l.b16 %v131
    %v148 = vunpack.c.l.b16 %v132
    %v149 = vunpack.c.l.b16 %v133
    %v150 = vpack.c.b16 %v143, %v142
    %v151 = vpack.c.b16 %v145, %v144
    %v152 = vpack.c.b16 %v147, %v146
    %v153 = vpack.c.b16 %v149, %v148
    %vm154 = vcmask 105472
    %v156 = vsel %vm154, %v150, 0
    %v159 = vsel %vm154, %v151, 0
    %v162 = vsel %vm154, %v152, 0
    %v165 = vsel %vm154, %v153, 0
    %v168 = vsel %vm154, %v94, 0
    %v171 = vsel %vm154, %v95, 0
    %v174 = vsel %vm154, %v96, 0
    %v177 = vsel %vm154, %v97, 0
    %v180 = vsel %vm154, %v98, 0
    %v183 = vsel %vm154, %v99, 0
    %v186 = vsel %vm154, %v100, 0
    %v189 = vsel %vm154, %v101, 0
    %v192 = vsel %vm154, %v102, 0
    %v195 = vsel %vm154, %v103, 0
    %v198 = vsel %vm154, %v104, 0
    %v201 = vsel %vm154, %v105, 0
    %v204 = vsel %vm154, %v106, 0
    %v207 = vsel %vm154, %v107, 0
    %v210 = vsel %vm154, %v108, 0
    %v213 = vsel %vm154, %v109, 0
    %v216 = vsel %vm154, %v110, 0
    %v219 = vsel %vm154, %v111, 0
    %v222 = vsel %vm154, %v112, 0
    %v225 = vsel %vm154, %v113, 0
    %v228 = vsel %vm154, %v114, 0
    %v231 = vsel %vm154, %v115, 0
    %v234 = vsel %vm154, %v116, 0
    %v237 = vsel %vm154, %v117, 0
    %v240 = vsel %vm154, %v118, 0
    %v243 = vsel %vm154, %v119, 0
    %v246 = vsel %vm154, %v120, 0
    %v249 = vsel %vm154, %v121, 0
    %v252 = vsel %vm154, %v122, 0
    %v255 = vsel %vm154, %v123, 0
    %v258 = vsel %vm154, %v124, 0
    %v261 = vsel %vm154, %v125, 0
    %263 = vmatprep.subr.bf16.mxu0 0
    %264 = vmatpush1.bf16.xpose.msra.mxu0 %v168
    %265 = vmatprep.subr.bf16.mxu0 0
    %266 = vmatpush1.bf16.xpose.msra.mxu0 %v171
    %267 = vmatprep.subr.bf16.mxu0 0
    %268 = vmatpush1.bf16.xpose.msra.mxu0 %v174
    %269 = vmatprep.subr.bf16.mxu0 0
    %270 = vmatpush1.bf16.xpose.msra.mxu0 %v177
    %271 = vmatprep.subr.bf16.mxu0 0
    %272 = vmatpush1.bf16.xpose.msra.mxu0 %v180
    %273 = vmatprep.subr.bf16.mxu0 0
    %274 = vmatpush1.bf16.xpose.msra.mxu0 %v183
    %275 = vmatprep.subr.bf16.mxu0 0
    %276 = vmatpush1.bf16.xpose.msra.mxu0 %v186
    %277 = vmatprep.subr.bf16.mxu0 0
    %278 = vmatpush1.bf16.xpose.msra.mxu0 %v189
    %279 = vmatprep.subr.bf16.mxu0 0
    %280 = vmatpush1.bf16.xpose.msra.mxu0 %v192
    %281 = vmatprep.subr.bf16.mxu0 0
    %282 = vmatpush1.bf16.xpose.msra.mxu0 %v195
    %283 = vmatprep.subr.bf16.mxu0 0
    %284 = vmatpush1.bf16.xpose.msra.mxu0 %v198
    %285 = vmatprep.subr.bf16.mxu0 0
    %286 = vmatpush1.bf16.xpose.msra.mxu0 %v201
    %287 = vmatprep.subr.bf16.mxu0 0
    %288 = vmatpush1.bf16.xpose.msra.mxu0 %v204
    %289 = vmatprep.subr.bf16.mxu0 0
    %290 = vmatpush1.bf16.xpose.msra.mxu0 %v207
    %291 = vmatprep.subr.bf16.mxu0 0
    %292 = vmatpush1.bf16.xpose.msra.mxu0 %v210
    %293 = vmatprep.subr.bf16.mxu0 0
    %294 = vmatpush1.bf16.xpose.msra.mxu0 %v213
    %295 = vmatprep.mubr.bf16.mxu0 0
    %296 = vmatmul.mubr.bf16.gmra.mrb[0].mxu0 %v156
    %v297 = vpop.f32.mrb[0].mxu0
    %v298 = vadd.f32 0.0, %v297
    %v299 = vpop.f32.mrb[0].mxu0
    %v300 = vadd.f32 0.0, %v299
    %v301 = vpop.f32.mrb[0].mxu0
    %v302 = vadd.f32 0.0, %v301
    %v303 = vpop.f32.mrb[0].mxu0
    %v304 = vadd.f32 0.0, %v303
    %305 = vmatprep.mubr.bf16.mxu0 0
    %306 = vmatmul.mubr.bf16.gmra.mrb[0].mxu0 %v159
    %v307 = vpop.f32.mrb[0].mxu0
    %v308 = vadd.f32 0.0, %v307
    %v309 = vpop.f32.mrb[0].mxu0
    %v310 = vadd.f32 0.0, %v309
    %v311 = vpop.f32.mrb[0].mxu0
    %v312 = vadd.f32 0.0, %v311
    %v313 = vpop.f32.mrb[0].mxu0
    %v314 = vadd.f32 0.0, %v313
    %315 = vmatprep.mubr.bf16.mxu0 0
    %316 = vmatmul.mubr.bf16.gmra.mrb[0].mxu0 %v162
    %v317 = vpop.f32.mrb[0].mxu0
    %v318 = vadd.f32 0.0, %v317
    %v319 = vpop.f32.mrb[0].mxu0
    %v320 = vadd.f32 0.0, %v319
    %v321 = vpop.f32.mrb[0].mxu0
    %v322 = vadd.f32 0.0, %v321
    %v323 = vpop.f32.mrb[0].mxu0
    %v324 = vadd.f32 0.0, %v323
    %325 = vmatprep.mubr.bf16.mxu0 0
    %326 = vmatmul.mubr.bf16.gmra.mrb[0].mxu0 %v165
    %v327 = vpop.f32.mrb[0].mxu0
    %v328 = vadd.f32 0.0, %v327
    %v329 = vpop.f32.mrb[0].mxu0
    %v330 = vadd.f32 0.0, %v329
    %v331 = vpop.f32.mrb[0].mxu0
    %v332 = vadd.f32 0.0, %v331
    %v333 = vpop.f32.mrb[0].mxu0
    %v334 = vadd.f32 0.0, %v333
    %335 = vdwg.mxu0
    %336 = vmatprep.subr.bf16.mxu0 0
    %337 = vmatpush1.bf16.xpose.msra.mxu0 %v216
    %338 = vmatprep.subr.bf16.mxu0 0
    %339 = vmatpush1.bf16.xpose.msra.mxu0 %v219
    %340 = vmatprep.subr.bf16.mxu0 0
    %341 = vmatpush1.bf16.xpose.msra.mxu0 %v222
    %342 = vmatprep.subr.bf16.mxu0 0
    %343 = vmatpush1.bf16.xpose.msra.mxu0 %v225
    %344 = vmatprep.subr.bf16.mxu0 0
    %345 = vmatpush1.bf16.xpose.msra.mxu0 %v228
    %346 = vmatprep.subr.bf16.mxu0 0
    %347 = vmatpush1.bf16.xpose.msra.mxu0 %v231
    %348 = vmatprep.subr.bf16.mxu0 0
    %349 = vmatpush1.bf16.xpose.msra.mxu0 %v234
    %350 = vmatprep.subr.bf16.mxu0 0
    %351 = vmatpush1.bf16.xpose.msra.mxu0 %v237
    %352 = vmatprep.subr.bf16.mxu0 0
    %353 = vmatpush1.bf16.xpose.msra.mxu0 %v240
    %354 = vmatprep.subr.bf16.mxu0 0
    %355 = vmatpush1.bf16.xpose.msra.mxu0 %v243
    %356 = vmatprep.subr.bf16.mxu0 0
    %357 = vmatpush1.bf16.xpose.msra.mxu0 %v246
    %358 = vmatprep.subr.bf16.mxu0 0
    %359 = vmatpush1.bf16.xpose.msra.mxu0 %v249
    %360 = vmatprep.subr.bf16.mxu0 0
    %361 = vmatpush1.bf16.xpose.msra.mxu0 %v252
    %362 = vmatprep.subr.bf16.mxu0 0
    %363 = vmatpush1.bf16.xpose.msra.mxu0 %v255
    %364 = vmatprep.subr.bf16.mxu0 0
    %365 = vmatpush1.bf16.xpose.msra.mxu0 %v258
    %366 = vmatprep.subr.bf16.mxu0 0
    %367 = vmatpush1.bf16.xpose.msra.mxu0 %v261
    %368 = vmatprep.mubr.bf16.mxu0 0
    %369 = vmatmul.mubr.bf16.gmra.mrb[0].mxu0 %v156
    %v370 = vpop.f32.mrb[0].mxu0
    %v371 = vadd.f32 0.0, %v370
    %v372 = vpop.f32.mrb[0].mxu0
    %v373 = vadd.f32 0.0, %v372
    %v374 = vpop.f32.mrb[0].mxu0
    %v375 = vadd.f32 0.0, %v374
    %v376 = vpop.f32.mrb[0].mxu0
    %v377 = vadd.f32 0.0, %v376
    %378 = vmatprep.mubr.bf16.mxu0 0
    %379 = vmatmul.mubr.bf16.gmra.mrb[0].mxu0 %v159
    %v380 = vpop.f32.mrb[0].mxu0
    %v381 = vadd.f32 0.0, %v380
    %v382 = vpop.f32.mrb[0].mxu0
    %v383 = vadd.f32 0.0, %v382
    %v384 = vpop.f32.mrb[0].mxu0
    %v385 = vadd.f32 0.0, %v384
    %v386 = vpop.f32.mrb[0].mxu0
    %v387 = vadd.f32 0.0, %v386
    %388 = vmatprep.mubr.bf16.mxu0 0
    %389 = vmatmul.mubr.bf16.gmra.mrb[0].mxu0 %v162
    %v390 = vpop.f32.mrb[0].mxu0
    %v391 = vadd.f32 0.0, %v390
    %v392 = vpop.f32.mrb[0].mxu0
    %v393 = vadd.f32 0.0, %v392
    %v394 = vpop.f32.mrb[0].mxu0
    %v395 = vadd.f32 0.0, %v394
    %v396 = vpop.f32.mrb[0].mxu0
    %v397 = vadd.f32 0.0, %v396
    %398 = vmatprep.mubr.bf16.mxu0 0
    %399 = vmatmul.mubr.bf16.gmra.mrb[0].mxu0 %v165
    %v400 = vpop.f32.mrb[0].mxu0
    %v401 = vadd.f32 0.0, %v400
    %v402 = vpop.f32.mrb[0].mxu0
    %v403 = vadd.f32 0.0, %v402
    %v404 = vpop.f32.mrb[0].mxu0
    %v405 = vadd.f32 0.0, %v404
    %v406 = vpop.f32.mrb[0].mxu0
    %v407 = vadd.f32 0.0, %v406
    %408 = vdwg.mxu0
    %v409 = vpack.c.bf16 %v302, %v298
    %v410 = vpack.c.bf16 %v304, %v300
    %v411 = vpack.c.bf16 %v375, %v371
    %v412 = vpack.c.bf16 %v377, %v373
    %v413 = vpack.c.bf16 %v312, %v308
    %v414 = vpack.c.bf16 %v314, %v310
    %v415 = vpack.c.bf16 %v385, %v381
    %v416 = vpack.c.bf16 %v387, %v383
    %v417 = vpack.c.bf16 %v322, %v318
    %v418 = vpack.c.bf16 %v324, %v320
    %v419 = vpack.c.bf16 %v395, %v391
    %v420 = vpack.c.bf16 %v397, %v393
    %v421 = vpack.c.bf16 %v332, %v328
    %v422 = vpack.c.bf16 %v334, %v330
    %v423 = vpack.c.bf16 %v405, %v401
    %v424 = vpack.c.bf16 %v407, %v403
    %v425 = vld [vmem:[%s2] sm:$0xf]
    %v426 = vld [vmem:[%s2 + $0x4] sm:$0xf]
    %v427 = vld [vmem:[%s2 + $0x8] sm:$0xf]
    %v428 = vld [vmem:[%s2 + $0xc] sm:$0xf]
    %v429 = vld [vmem:[%s2 + $0x10] sm:$0xf]
    %v430 = vld [vmem:[%s2 + $0x14] sm:$0xf]
    %v431 = vld [vmem:[%s2 + $0x18] sm:$0xf]
    %v432 = vld [vmem:[%s2 + $0x1c] sm:$0xf]
    %434 = vset.pattern.permute.xlu0 0
    %435 = vperm.xlu0 %434, %v425
    %v436 = vpop.permute.xlu0 %435
    %v439 = vunpack.c.l.s4 839922192
    %v440 = vunpack.c.0.s8 %v439
    %v441 = vlaneseq
    %v442 = vshrl.u32 %v441, 7
    %v443 = vsub.s32 %v440, %v442
    %v444 = vrot.slane %v436, %v443
    %446 = vset.pattern.permute.xlu0 0
    %447 = vperm.xlu0 %446, %v426
    %v448 = vpop.permute.xlu0 %447
    %v451 = vunpack.c.l.s4 839922192
    %v452 = vunpack.c.0.s8 %v451
    %v453 = vlaneseq
    %v454 = vshrl.u32 %v453, 7
    %v455 = vsub.s32 %v452, %v454
    %v456 = vrot.slane %v448, %v455
    %458 = vset.pattern.permute.xlu0 0
    %459 = vperm.xlu0 %458, %v427
    %v460 = vpop.permute.xlu0 %459
    %v463 = vunpack.c.l.s4 839922192
    %v464 = vunpack.c.0.s8 %v463
    %v465 = vlaneseq
    %v466 = vshrl.u32 %v465, 7
    %v467 = vsub.s32 %v464, %v466
    %v468 = vrot.slane %v460, %v467
    %470 = vset.pattern.permute.xlu0 0
    %471 = vperm.xlu0 %470, %v428
    %v472 = vpop.permute.xlu0 %471
    %v475 = vunpack.c.l.s4 839922192
    %v476 = vunpack.c.0.s8 %v475
    %v477 = vlaneseq
    %v478 = vshrl.u32 %v477, 7
    %v479 = vsub.s32 %v476, %v478
    %v480 = vrot.slane %v472, %v479
    %482 = vset.pattern.permute.xlu0 0
    %483 = vperm.xlu0 %482, %v429
    %v484 = vpop.permute.xlu0 %483
    %v487 = vunpack.c.l.s4 839922192
    %v488 = vunpack.c.0.s8 %v487
    %v489 = vlaneseq
    %v490 = vshrl.u32 %v489, 7
    %v491 = vsub.s32 %v488, %v490
    %v492 = vrot.slane %v484, %v491
    %494 = vset.pattern.permute.xlu0 0
    %495 = vperm.xlu0 %494, %v430
    %v496 = vpop.permute.xlu0 %495
    %v499 = vunpack.c.l.s4 839922192
    %v500 = vunpack.c.0.s8 %v499
    %v501 = vlaneseq
    %v502 = vshrl.u32 %v501, 7
    %v503 = vsub.s32 %v500, %v502
    %v504 = vrot.slane %v496, %v503
    %506 = vset.pattern.permute.xlu0 0
    %507 = vperm.xlu0 %506, %v431
    %v508 = vpop.permute.xlu0 %507
    %v511 = vunpack.c.l.s4 839922192
    %v512 = vunpack.c.0.s8 %v511
    %v513 = vlaneseq
    %v514 = vshrl.u32 %v513, 7
    %v515 = vsub.s32 %v512, %v514
    %v516 = vrot.slane %v508, %v515
    %518 = vset.pattern.permute.xlu0 0
    %519 = vperm.xlu0 %518, %v432
    %v520 = vpop.permute.xlu0 %519
    %v523 = vunpack.c.l.s4 839922192
    %v524 = vunpack.c.0.s8 %v523
    %v525 = vlaneseq
    %v526 = vshrl.u32 %v525, 7
    %v527 = vsub.s32 %v524, %v526
    %v528 = vrot.slane %v520, %v527
    %v537 = vunpack.c.l.b16 %v444
    %v538 = vunpack.c.l.b16 %v456
    %v539 = vunpack.c.l.b16 %v468
    %v540 = vunpack.c.l.b16 %v480
    %v541 = vunpack.c.l.b16 %v492
    %v542 = vunpack.c.l.b16 %v504
    %v543 = vunpack.c.l.b16 %v516
    %v544 = vunpack.c.l.b16 %v528
    %v545 = vpack.c.b16 %v538, %v537
    %v546 = vpack.c.b16 %v540, %v539
    %v547 = vpack.c.b16 %v542, %v541
    %v548 = vpack.c.b16 %v544, %v543
    %v553 = vadd.bf16 %v409, %v545
    %v554 = vadd.bf16 %v410, %v545
    %v555 = vadd.bf16 %v411, %v545
    %v556 = vadd.bf16 %v412, %v545
    %v557 = vadd.bf16 %v413, %v546
    %v558 = vadd.bf16 %v414, %v546
    %v559 = vadd.bf16 %v415, %v546
    %v560 = vadd.bf16 %v416, %v546
    %v561 = vadd.bf16 %v417, %v547
    %v562 = vadd.bf16 %v418, %v547
    %v563 = vadd.bf16 %v419, %v547
    %v564 = vadd.bf16 %v420, %v547
    %v565 = vadd.bf16 %v421, %v548
    %v566 = vadd.bf16 %v422, %v548
    %v567 = vadd.bf16 %v423, %v548
    %v568 = vadd.bf16 %v424, %v548
    %v569 = vmax.bf16 %v553, 0
    %v570 = vmax.bf16 %v554, 0
    %v571 = vmax.bf16 %v555, 0
    %v572 = vmax.bf16 %v556, 0
    %v573 = vmax.bf16 %v557, 0
    %v574 = vmax.bf16 %v558, 0
    %v575 = vmax.bf16 %v559, 0
    %v576 = vmax.bf16 %v560, 0
    %v577 = vmax.bf16 %v561, 0
    %v578 = vmax.bf16 %v562, 0
    %v579 = vmax.bf16 %v563, 0
    %v580 = vmax.bf16 %v564, 0
    %v581 = vmax.bf16 %v565, 0
    %v582 = vmax.bf16 %v566, 0
    %v583 = vmax.bf16 %v567, 0
    %v584 = vmax.bf16 %v568, 0
    %v585 = vld [vmem:[%s3] sm:$0xf]
    %v586 = vld [vmem:[%s3 + $0x4] sm:$0xf]
    %v587 = vld [vmem:[%s3 + $0x8] sm:$0xf]
    %v588 = vld [vmem:[%s3 + $0xc] sm:$0xf]
    %v589 = vld [vmem:[%s3 + $0x10] sm:$0xf]
    %v590 = vld [vmem:[%s3 + $0x14] sm:$0xf]
    %v591 = vld [vmem:[%s3 + $0x18] sm:$0xf]
    %v592 = vld [vmem:[%s3 + $0x1c] sm:$0xf]
    %v593 = vld [vmem:[%s4] sm:$0xff]
    %v594 = vld [vmem:[%s4 + $0x8] sm:$0xff]
    %v595 = vld [vmem:[%s4 + $0x10] sm:$0xff]
    %v596 = vld [vmem:[%s4 + $0x18] sm:$0xff]
    %v597 = vld [vmem:[%s4 + $0x20] sm:$0xff]
    %v598 = vld [vmem:[%s4 + $0x28] sm:$0xff]
    %v599 = vld [vmem:[%s4 + $0x30] sm:$0xff]
    %v600 = vld [vmem:[%s4 + $0x38] sm:$0xff]
    %602 = vset.pattern.permute.xlu0 0
    %603 = vperm.xlu0 %602, %v593
    %v604 = vpop.permute.xlu0 %603
    %607 = vset.pattern.permute.xlu0 0
    %608 = vperm.xlu0 %607, %v594
    %v609 = vpop.permute.xlu0 %608
    %612 = vset.pattern.permute.xlu0 0
    %613 = vperm.xlu0 %612, %v595
    %v614 = vpop.permute.xlu0 %613
    %617 = vset.pattern.permute.xlu0 0
    %618 = vperm.xlu0 %617, %v596
    %v619 = vpop.permute.xlu0 %618
    %622 = vset.pattern.permute.xlu0 0
    %623 = vperm.xlu0 %622, %v597
    %v624 = vpop.permute.xlu0 %623
    %627 = vset.pattern.permute.xlu0 0
    %628 = vperm.xlu0 %627, %v598
    %v629 = vpop.permute.xlu0 %628
    %632 = vset.pattern.permute.xlu0 0
    %633 = vperm.xlu0 %632, %v599
    %v634 = vpop.permute.xlu0 %633
    %637 = vset.pattern.permute.xlu0 0
    %638 = vperm.xlu0 %637, %v600
    %v639 = vpop.permute.xlu0 %638
    %v649 = vunpack.c.l.b16 %v585
    %v650 = vunpack.c.l.b16 %v586
    %v651 = vunpack.c.l.b16 %v587
    %v652 = vunpack.c.l.b16 %v588
    %v653 = vunpack.c.l.b16 %v589
    %v654 = vunpack.c.l.b16 %v590
    %v655 = vunpack.c.l.b16 %v591
    %v656 = vunpack.c.l.b16 %v592
    %v657 = vpack.c.b16 %v650, %v649
    %v658 = vpack.c.b16 %v652, %v651
    %v659 = vpack.c.b16 %v654, %v653
    %v660 = vpack.c.b16 %v656, %v655
    %vm661 = vcmask 523264
    %v663 = vsel %vm661, %v657, 0
    %v666 = vsel %vm661, %v658, 0
    %v669 = vsel %vm661, %v659, 0
    %v672 = vsel %vm661, %v660, 0
    %674 = vmatprep.subr.bf16.mxu0 %v570
    %675 = vmatpush1.bf16.msra.mxu0 %v569
    %676 = vmatprep.subr.bf16.mxu0 %v574
    %677 = vmatpush1.bf16.msra.mxu0 %v573
    %678 = vmatprep.subr.bf16.mxu0 %v578
    %679 = vmatpush1.bf16.msra.mxu0 %v577
    %680 = vmatprep.subr.bf16.mxu0 %v582
    %681 = vmatpush1.bf16.msra.mxu0 %v581
    %682 = vmatprep.subr.bf16.mxu0 0
    %683 = vmatpush1.bf16.msra.mxu0 0
    %684 = vmatprep.subr.bf16.mxu0 0
    %685 = vmatpush1.bf16.msra.mxu0 0
    %686 = vmatprep.subr.bf16.mxu0 0
    %687 = vmatpush1.bf16.msra.mxu0 0
    %688 = vmatprep.subr.bf16.mxu0 0
    %689 = vmatpush1.bf16.msra.mxu0 0
    %690 = vmatprep.subr.bf16.mxu0 0
    %691 = vmatpush1.bf16.msra.mxu0 0
    %692 = vmatprep.subr.bf16.mxu0 0
    %693 = vmatpush1.bf16.msra.mxu0 0
    %694 = vmatprep.subr.bf16.mxu0 0
    %695 = vmatpush1.bf16.msra.mxu0 0
    %696 = vmatprep.subr.bf16.mxu0 0
    %697 = vmatpush1.bf16.msra.mxu0 0
    %698 = vmatprep.subr.bf16.mxu0 0
    %699 = vmatpush1.bf16.msra.mxu0 0
    %700 = vmatprep.subr.bf16.mxu0 0
    %701 = vmatpush1.bf16.msra.mxu0 0
    %702 = vmatprep.subr.bf16.mxu0 0
    %703 = vmatpush1.bf16.msra.mxu0 0
    %704 = vmatprep.subr.bf16.mxu0 0
    %705 = vmatpush1.bf16.msra.mxu0 0
    %706 = vmatprep.mubr.bf16.mxu0 0
    %707 = vmatmul.mubr.bf16.gmra.mrb[0].mxu0 %v663
    %v708 = vpop.f32.mrb[0].mxu0
    %v709 = vadd.f32 %v604, %v708
    %v710 = vpop.f32.mrb[0].mxu0
    %v711 = vadd.f32 %v604, %v710
    %v712 = vpop.f32.mrb[0].mxu0
    %v713 = vadd.f32 %v609, %v712
    %v714 = vpop.f32.mrb[0].mxu0
    %v715 = vadd.f32 %v609, %v714
    %716 = vmatprep.mubr.bf16.mxu0 0
    %717 = vmatmul.mubr.bf16.gmra.mrb[0].mxu0 %v666
    %v718 = vpop.f32.mrb[0].mxu0
    %v719 = vadd.f32 %v614, %v718
    %v720 = vpop.f32.mrb[0].mxu0
    %v721 = vadd.f32 %v614, %v720
    %v722 = vpop.f32.mrb[0].mxu0
    %v723 = vadd.f32 %v619, %v722
    %v724 = vpop.f32.mrb[0].mxu0
    %v725 = vadd.f32 %v619, %v724
    %726 = vmatprep.mubr.bf16.mxu0 0
    %727 = vmatmul.mubr.bf16.gmra.mrb[0].mxu0 %v669
    %v728 = vpop.f32.mrb[0].mxu0
    %v729 = vadd.f32 %v624, %v728
    %v730 = vpop.f32.mrb[0].mxu0
    %v731 = vadd.f32 %v624, %v730
    %v732 = vpop.f32.mrb[0].mxu0
    %v733 = vadd.f32 %v629, %v732
    %v734 = vpop.f32.mrb[0].mxu0
    %v735 = vadd.f32 %v629, %v734
    %736 = vmatprep.mubr.bf16.mxu0 0
    %737 = vmatmul.mubr.bf16.gmra.mrb[0].mxu0 %v672
    %v738 = vpop.f32.mrb[0].mxu0
    %v739 = vadd.f32 %v634, %v738
    %v740 = vpop.f32.mrb[0].mxu0
    %v741 = vadd.f32 %v634, %v740
    %v742 = vpop.f32.mrb[0].mxu0
    %v743 = vadd.f32 %v639, %v742
    %v744 = vpop.f32.mrb[0].mxu0
    %v745 = vadd.f32 %v639, %v744
    %746 = vdwg.mxu0
    %747 = vmatprep.subr.bf16.mxu0 %v572
    %748 = vmatpush1.bf16.msra.mxu0 %v571
    %749 = vmatprep.subr.bf16.mxu0 %v576
    %750 = vmatpush1.bf16.msra.mxu0 %v575
    %751 = vmatprep.subr.bf16.mxu0 %v580
    %752 = vmatpush1.bf16.msra.mxu0 %v579
    %753 = vmatprep.subr.bf16.mxu0 %v584
    %754 = vmatpush1.bf16.msra.mxu0 %v583
    %755 = vmatprep.subr.bf16.mxu0 0
    %756 = vmatpush1.bf16.msra.mxu0 0
    %757 = vmatprep.subr.bf16.mxu0 0
    %758 = vmatpush1.bf16.msra.mxu0 0
    %759 = vmatprep.subr.bf16.mxu0 0
    %760 = vmatpush1.bf16.msra.mxu0 0
    %761 = vmatprep.subr.bf16.mxu0 0
    %762 = vmatpush1.bf16.msra.mxu0 0
    %763 = vmatprep.subr.bf16.mxu0 0
    %764 = vmatpush1.bf16.msra.mxu0 0
    %765 = vmatprep.subr.bf16.mxu0 0
    %766 = vmatpush1.bf16.msra.mxu0 0
    %767 = vmatprep.subr.bf16.mxu0 0
    %768 = vmatpush1.bf16.msra.mxu0 0
    %769 = vmatprep.subr.bf16.mxu0 0
    %770 = vmatpush1.bf16.msra.mxu0 0
    %771 = vmatprep.subr.bf16.mxu0 0
    %772 = vmatpush1.bf16.msra.mxu0 0
    %773 = vmatprep.subr.bf16.mxu0 0
    %774 = vmatpush1.bf16.msra.mxu0 0
    %775 = vmatprep.subr.bf16.mxu0 0
    %776 = vmatpush1.bf16.msra.mxu0 0
    %777 = vmatprep.subr.bf16.mxu0 0
    %778 = vmatpush1.bf16.msra.mxu0 0
    %779 = vmatprep.mubr.bf16.mxu0 0
    %780 = vmatmul.mubr.bf16.gmra.mrb[0].mxu0 %v663
    %v781 = vpop.f32.mrb[0].mxu0
    %v782 = vadd.f32 %v604, %v781
    %v783 = vpop.f32.mrb[0].mxu0
    %v784 = vadd.f32 %v604, %v783
    %v785 = vpop.f32.mrb[0].mxu0
    %v786 = vadd.f32 %v609, %v785
    %v787 = vpop.f32.mrb[0].mxu0
    %v788 = vadd.f32 %v609, %v787
    %789 = vmatprep.mubr.bf16.mxu0 0
    %790 = vmatmul.mubr.bf16.gmra.mrb[0].mxu0 %v666
    %v791 = vpop.f32.mrb[0].mxu0
    %v792 = vadd.f32 %v614, %v791
    %v793 = vpop.f32.mrb[0].mxu0
    %v794 = vadd.f32 %v614, %v793
    %v795 = vpop.f32.mrb[0].mxu0
    %v796 = vadd.f32 %v619, %v795
    %v797 = vpop.f32.mrb[0].mxu0
    %v798 = vadd.f32 %v619, %v797
    %799 = vmatprep.mubr.bf16.mxu0 0
    %800 = vmatmul.mubr.bf16.gmra.mrb[0].mxu0 %v669
    %v801 = vpop.f32.mrb[0].mxu0
    %v802 = vadd.f32 %v624, %v801
    %v803 = vpop.f32.mrb[0].mxu0
    %v804 = vadd.f32 %v624, %v803
    %v805 = vpop.f32.mrb[0].mxu0
    %v806 = vadd.f32 %v629, %v805
    %v807 = vpop.f32.mrb[0].mxu0
    %v808 = vadd.f32 %v629, %v807
    %809 = vmatprep.mubr.bf16.mxu0 0
    %810 = vmatmul.mubr.bf16.gmra.mrb[0].mxu0 %v672
    %v811 = vpop.f32.mrb[0].mxu0
    %v812 = vadd.f32 %v634, %v811
    %v813 = vpop.f32.mrb[0].mxu0
    %v814 = vadd.f32 %v634, %v813
    %v815 = vpop.f32.mrb[0].mxu0
    %v816 = vadd.f32 %v639, %v815
    %v817 = vpop.f32.mrb[0].mxu0
    %v818 = vadd.f32 %v639, %v817
    %819 = vdwg.mxu0
    %v820 = vmax.f32 %v709, 0.0
    %v821 = vmax.f32 %v711, 0.0
    %v822 = vmax.f32 %v782, 0.0
    %v823 = vmax.f32 %v784, 0.0
    %v824 = vmax.f32 %v713, 0.0
    %v825 = vmax.f32 %v715, 0.0
    %v826 = vmax.f32 %v786, 0.0
    %v827 = vmax.f32 %v788, 0.0
    %v828 = vmax.f32 %v719, 0.0
    %v829 = vmax.f32 %v721, 0.0
    %v830 = vmax.f32 %v792, 0.0
    %v831 = vmax.f32 %v794, 0.0
    %v832 = vmax.f32 %v723, 0.0
    %v833 = vmax.f32 %v725, 0.0
    %v834 = vmax.f32 %v796, 0.0
    %v835 = vmax.f32 %v798, 0.0
    %v836 = vmax.f32 %v729, 0.0
    %v837 = vmax.f32 %v731, 0.0
    %v838 = vmax.f32 %v802, 0.0
    %v839 = vmax.f32 %v804, 0.0
    %v840 = vmax.f32 %v733, 0.0
    %v841 = vmax.f32 %v735, 0.0
    %v842 = vmax.f32 %v806, 0.0
    %v843 = vmax.f32 %v808, 0.0
    %v844 = vmax.f32 %v739, 0.0
    %v845 = vmax.f32 %v741, 0.0
    %v846 = vmax.f32 %v812, 0.0
    %v847 = vmax.f32 %v814, 0.0
    %v848 = vmax.f32 %v743, 0.0
    %v849 = vmax.f32 %v745, 0.0
    %v850 = vmax.f32 %v816, 0.0
    %v851 = vmax.f32 %v818, 0.0
    %v852 = vld [vmem:[%s5] sm:$0xff]
    %v853 = vld [vmem:[%s5 + $0x8] sm:$0xff]
    %v854 = vld [vmem:[%s5 + $0x10] sm:$0xff]
    %v855 = vld [vmem:[%s5 + $0x18] sm:$0xff]
    %v856 = vld [vmem:[%s5 + $0x20] sm:$0xff]
    %v857 = vld [vmem:[%s5 + $0x28] sm:$0xff]
    %v858 = vld [vmem:[%s5 + $0x30] sm:$0xff]
    %v859 = vld [vmem:[%s5 + $0x38] sm:$0xff]
    %861 = vset.pattern.permute.xlu0 0
    %862 = vperm.xlu0 %861, %v852
    %v863 = vpop.permute.xlu0 %862
    %866 = vset.pattern.permute.xlu0 0
    %867 = vperm.xlu0 %866, %v853
    %v868 = vpop.permute.xlu0 %867
    %871 = vset.pattern.permute.xlu0 0
    %872 = vperm.xlu0 %871, %v854
    %v873 = vpop.permute.xlu0 %872
    %876 = vset.pattern.permute.xlu0 0
    %877 = vperm.xlu0 %876, %v855
    %v878 = vpop.permute.xlu0 %877
    %881 = vset.pattern.permute.xlu0 0
    %882 = vperm.xlu0 %881, %v856
    %v883 = vpop.permute.xlu0 %882
    %886 = vset.pattern.permute.xlu0 0
    %887 = vperm.xlu0 %886, %v857
    %v888 = vpop.permute.xlu0 %887
    %891 = vset.pattern.permute.xlu0 0
    %892 = vperm.xlu0 %891, %v858
    %v893 = vpop.permute.xlu0 %892
    %896 = vset.pattern.permute.xlu0 0
    %897 = vperm.xlu0 %896, %v859
    %v898 = vpop.permute.xlu0 %897
    %v900 = vmul.f32 %v820, %v863
    %v901 = vmul.f32 %v821, %v863
    %v902 = vmul.f32 %v822, %v863
    %v903 = vmul.f32 %v823, %v863
    %v904 = vmul.f32 %v824, %v868
    %v905 = vmul.f32 %v825, %v868
    %v906 = vmul.f32 %v826, %v868
    %v907 = vmul.f32 %v827, %v868
    %v908 = vmul.f32 %v828, %v873
    %v909 = vmul.f32 %v829, %v873
    %v910 = vmul.f32 %v830, %v873
    %v911 = vmul.f32 %v831, %v873
    %v912 = vmul.f32 %v832, %v878
    %v913 = vmul.f32 %v833, %v878
    %v914 = vmul.f32 %v834, %v878
    %v915 = vmul.f32 %v835, %v878
    %v916 = vmul.f32 %v836, %v883
    %v917 = vmul.f32 %v837, %v883
    %v918 = vmul.f32 %v838, %v883
    %v919 = vmul.f32 %v839, %v883
    %v920 = vmul.f32 %v840, %v888
    %v921 = vmul.f32 %v841, %v888
    %v922 = vmul.f32 %v842, %v888
    %v923 = vmul.f32 %v843, %v888
    %v924 = vmul.f32 %v844, %v893
    %v925 = vmul.f32 %v845, %v893
    %v926 = vmul.f32 %v846, %v893
    %v927 = vmul.f32 %v847, %v893
    %v928 = vmul.f32 %v848, %v898
    %v929 = vmul.f32 %v849, %v898
    %v930 = vmul.f32 %v850, %v898
    %v931 = vmul.f32 %v851, %v898
    %v932 = vadd.f32 %v900, %v904
    %v933 = vadd.f32 %v932, %v908
    %v934 = vadd.f32 %v933, %v912
    %v935 = vadd.f32 %v934, %v916
    %v936 = vadd.f32 %v935, %v920
    %v937 = vadd.f32 %v936, %v924
    %v938 = vadd.f32 %v937, %v928
    %v939 = vrot.slane %v938, 4
    %v940 = vadd.f32 %v938, %v939
    %v941 = vrot.slane %v940, 2
    %v942 = vadd.f32 %v940, %v941
    %v943 = vrot.slane %v942, 1
    %v944 = vadd.f32 %v942, %v943
    %v945 = vadd.f32 %v901, %v905
    %v946 = vadd.f32 %v945, %v909
    %v947 = vadd.f32 %v946, %v913
    %v948 = vadd.f32 %v947, %v917
    %v949 = vadd.f32 %v948, %v921
    %v950 = vadd.f32 %v949, %v925
    %v951 = vadd.f32 %v950, %v929
    %v952 = vrot.slane %v951, 4
    %v953 = vadd.f32 %v951, %v952
    %v954 = vrot.slane %v953, 2
    %v955 = vadd.f32 %v953, %v954
    %v956 = vrot.slane %v955, 1
    %v957 = vadd.f32 %v955, %v956
    %v958 = vadd.f32 %v902, %v906
    %v959 = vadd.f32 %v958, %v910
    %v960 = vadd.f32 %v959, %v914
    %v961 = vadd.f32 %v960, %v918
    %v962 = vadd.f32 %v961, %v922
    %v963 = vadd.f32 %v962, %v926
    %v964 = vadd.f32 %v963, %v930
    %v965 = vrot.slane %v964, 4
    %v966 = vadd.f32 %v964, %v965
    %v967 = vrot.slane %v966, 2
    %v968 = vadd.f32 %v966, %v967
    %v969 = vrot.slane %v968, 1
    %v970 = vadd.f32 %v968, %v969
    %v971 = vadd.f32 %v903, %v907
    %v972 = vadd.f32 %v971, %v911
    %v973 = vadd.f32 %v972, %v915
    %v974 = vadd.f32 %v973, %v919
    %v975 = vadd.f32 %v974, %v923
    %v976 = vadd.f32 %v975, %v927
    %v977 = vadd.f32 %v976, %v931
    %v978 = vrot.slane %v977, 4
    %v979 = vadd.f32 %v977, %v978
    %v980 = vrot.slane %v979, 2
    %v981 = vadd.f32 %v979, %v980
    %v982 = vrot.slane %v981, 1
    %v983 = vadd.f32 %v981, %v982
    %v984 = vld [vmem:[#allocation2] sm:$0x1]
    %986 = vset.pattern.permute.xlu0 0
    %987 = vperm.xlu0 %986, %v984
    %v988 = vpop.permute.xlu0 %987
    %v990 = vlaneseq
    %v991 = vshrl.u32 %v990, 7
    %v992 = vsub.s32 0, %v991
    %v993 = vrot.slane %v988, %v992
    %v994 = vadd.f32 %v944, %v993
    %v995 = vadd.f32 %v957, %v993
    %v996 = vadd.f32 %v970, %v993
    %v997 = vadd.f32 %v983, %v993
    %v1002 = vcombine.low %v994, %v995
    %v1003 = vcombine.low %v996, %v997
    %v1005 = vunpack.c.l.s4 1966171168
    %v1006 = vunpack.c.0.s8 %v1005
    %v1007 = vlaneseq
    %v1008 = vshrl.u32 %v1007, 7
    %v1009 = vsub.s32 %v1006, %v1008
    %v1010 = vrot.slane %v1002, %v1009
    %v1012 = vunpack.c.l.s4 1966171168
    %v1013 = vunpack.c.0.s8 %v1012
    %v1014 = vlaneseq
    %v1015 = vshrl.u32 %v1014, 7
    %v1016 = vsub.s32 %v1013, %v1015
    %v1017 = vrot.slane %v1003, %v1016
    %v1018 = vcombine.low %v1010, %v1017
    %v1020 = vunpack.c.l.s4 1966171168
    %v1021 = vunpack.c.0.s8 %v1020
    %v1022 = vlaneseq
    %v1023 = vshrl.u32 %v1022, 7
    %v1024 = vsub.s32 %v1021, %v1023
    %v1025 = vrot.slane %v1018, %v1024
    %v1027 = vlaneseq
    %vm1028 = vcmp.ge.s32.totalorder %v1027, 0
    %vm1029 = vcmp.lt.s32.totalorder %v1027, 512
    %vm1030 = vmand %vm1028, %vm1029
    %1031 = vst.msk [vmem:[#allocation3] sm:$0xf] %vm1030, %v1025
    // Predicated region
    $region30: #{tpu_custom_call.1} parent=1 // pred_check
      _
    $region31: #{tpu_custom_call.1} parent=1 // pred_check_branch
      %1033 = sbr.rel (0) target = $region33
    $region32: #{tpu_custom_call.1} parent=1 // pred_region
      %s1035 = ssub.s32 64, 16
      %1036 = vsyncadd [#allocation4], %s1035
      %s1038 = sshll.u32 [#allocation3], 4
      %s1039 = int_to_ptr.vmem [resolvable:$true] %s1038
      %1041 = dma.vmem_to_hbm [thread:$0]  %s1039, 16, %s7, [#allocation4]
    $region33: #{tpu_custom_call.1} parent=1 // pred_fallthru
      _
    // Predicated region
    $region34: #{tpu_custom_call.1} parent=1 // pred_check
      _
    $region35: #{tpu_custom_call.1} parent=1 // pred_check_branch
      %1043 = sbr.rel (0) target = $region37
    $region36: #{tpu_custom_call.1} parent=1 // pred_region
      %1044 = dma.done [#allocation4], 64
    $region37: #{tpu_custom_call.1} parent=1 // pred_fallthru
      _
    %1045 = vsyncpa [#allocation4], 1

</llo_original>
